<compile_context>
chip_gen: v5e
topology: v5e:2x2
jax: 0.10.0
libtpu: 0.0.40
codegen_flags: <defaults>
</compile_context>

<pallas_src>
import math

import jax
import jax.numpy as jnp
from jax import lax
from jax.experimental import pallas as pl
from jax.experimental.pallas import tpu as pltpu

# ----------------------------------------------------------------------------
# Small config consistent with SSTv1.__init__
# ----------------------------------------------------------------------------
NUM_BLOCKS = 2          # num_blocks (each BasicShiftBlock = 2 encoder layers)
D_MODEL = 32            # d_model[i]
NHEAD = 2               # nhead[i]
DIM_FF = 64             # dim_feedforward[i]
IN_CHANNEL = 16         # in_channel -> linear0 exists
WINDOW_SHAPE = (12, 12) # window_shape (win_x, win_y)
POS_TEMPERATURE = 10000
NORMALIZE_POS = False
MAX_TOKENS = 8          # drop_info: single drop level with max_tokens tokens / window
NUM_SHIFTS = 2          # len(flat2win_inds_list)
LN_EPS = 1e-5           # nn.LayerNorm default

ROW_TILE_TARGET = 1024  # rows per grid step for linear0 / FFN kernels
WIN_BATCH_TARGET = 256  # windows per grid step for the MHA kernel


def _round_up(x, m):
    return ((x + m - 1) // m) * m


def _choose_row_tile(n, target=ROW_TILE_TARGET):
    # largest tile <= target, multiple of 8, never larger than padded N
    return min(target, _round_up(max(n, 1), 8))


def _choose_window_batch(w, target=WIN_BATCH_TARGET):
    return min(target, max(w, 1))


# ----------------------------------------------------------------------------
# Pallas kernels
# ----------------------------------------------------------------------------
def _pallas_linear(x, w_t, b_row, tile):
    """y = x @ w_t + b   (linear0).  x:[N,Cin] (N % tile == 0), w_t:[Cin,Cout], b_row:[1,Cout]."""
    n, cin = x.shape
    cout = w_t.shape[1]
    assert n % tile == 0

    def kernel(x_ref, w_ref, b_ref, o_ref):
        o_ref[...] = jnp.dot(x_ref[...], w_ref[...],
                             preferred_element_type=jnp.float32) + b_ref[...]

    return pl.pallas_call(
        kernel,
        out_shape=jax.ShapeDtypeStruct((n, cout), jnp.float32),
        grid=(n // tile,),
        in_specs=[
            pl.BlockSpec((tile, cin), lambda i: (i, 0)),
            pl.BlockSpec((cin, cout), lambda i: (0, 0)),
            pl.BlockSpec((1, cout), lambda i: (0, 0)),
        ],
        out_specs=pl.BlockSpec((tile, cout), lambda i: (i, 0)),
        compiler_params=pltpu.CompilerParams(dimension_semantics=("parallel",)),
    )(x, w_t, b_row)


def _pallas_window_mha(xw, pw, mask, p, nhead, wb):
    """Batched per-window multi-head self-attention (nn.MultiheadAttention, dropout=0).

    xw, pw : [W, T, C]  windowed features / positional embeddings (W % wb == 0)
    mask   : [W, T]     1.0 = valid token, 0.0 = padding (key_padding_mask)
    Each grid step processes wb windows; Q/K share one fused [C, 2C] projection,
    V uses [C, C]; per-head output projections are accumulated.
    """
    W, T, C = xw.shape
    assert W % wb == 0
    dh = C // nhead
    scale = 1.0 / math.sqrt(dh)

    def kernel(x_ref, p_ref, m_ref, wqk_ref, bqk_ref, wv_ref, bv_ref,
               wo_ref, bo_ref, o_ref):
        x3 = x_ref[...]                                            # [wb, T, C]
        qk_in = (x3 + p_ref[...]).reshape(wb * T, C)               # q = k = x + pos
        x2 = x3.reshape(wb * T, C)                                 # v = x
        qk = jnp.dot(qk_in, wqk_ref[...],
                     preferred_element_type=jnp.float32) + bqk_ref[...]   # [wb*T, 2C]
        v = jnp.dot(x2, wv_ref[...],
                    preferred_element_type=jnp.float32) + bv_ref[...]     # [wb*T, C]
        qk3 = qk.reshape(wb, T, 2 * C)
        v3 = v.reshape(wb, T, C)
        neg = (1.0 - m_ref[...]).reshape(wb, 1, T) * (-1e30)       # additive key mask

        acc = jnp.zeros((wb * T, C), jnp.float32)
        for h in range(nhead):                                     # static unroll (small H)
            lo = h * dh
            q_h = qk3[:, :, lo:lo + dh] * scale                    # [wb, T, dh]
            k_h = qk3[:, :, C + lo:C + lo + dh]                    # [wb, T, dh]
            v_h = v3[:, :, lo:lo + dh]                             # [wb, T, dh]
            s = lax.dot_general(q_h, k_h, (((2,), (2,)), ((0,), (0,))),
                                preferred_element_type=jnp.float32)        # [wb, T, T]
            s = s + neg
            s = s - jnp.max(s, axis=-1, keepdims=True)
            e = jnp.exp(s)
            a = e * pl.reciprocal(jnp.sum(e, axis=-1, keepdims=True), approx=True)
            hv = lax.dot_general(a, v_h, (((2,), (1,)), ((0,), (0,))),
                                 preferred_element_type=jnp.float32)       # [wb, T, dh]
            acc = acc + jnp.dot(hv.reshape(wb * T, dh), wo_ref[h],
                                preferred_element_type=jnp.float32)        # [wb*T, C]
        o_ref[...] = (acc + bo_ref[...]).reshape(wb, T, C)

    def rep(shape):
        nd = len(shape)
        return pl.BlockSpec(shape, lambda w, _nd=nd: (0,) * _nd)

    return pl.pallas_call(
        kernel,
        out_shape=jax.ShapeDtypeStruct((W, T, C), jnp.float32),
        grid=(W // wb,),
        in_specs=[
            pl.BlockSpec((wb, T, C), lambda w: (w, 0, 0)),
            pl.BlockSpec((wb, T, C), lambda w: (w, 0, 0)),
            pl.BlockSpec((wb, T), lambda w: (w, 0)),
            rep(p['wqk'].shape), rep(p['bqk'].shape),
            rep(p['wv'].shape), rep(p['bv'].shape),
            rep(p['wo_h'].shape), rep(p['bo'].shape),
        ],
        out_specs=pl.BlockSpec((wb, T, C), lambda w: (w, 0, 0)),
        compiler_params=pltpu.CompilerParams(dimension_semantics=("parallel",)),
    )(xw, pw, mask, p['wqk'], p['bqk'], p['wv'], p['bv'], p['wo_h'], p['bo'])


def _erf(x):
    # Abramowitz-Stegun 7.1.26 polynomial erf (|err| < 1.5e-7 ~ f32 eps).
    # Mosaic has no native erf lowering; this preserves PyTorch's exact-GELU semantics in f32.
    a1, a2, a3, a4, a5 = 0.254829592, -0.284496736, 1.421413741, -1.453152027, 1.061405429
    pp = 0.3275911
    ax = jnp.abs(x)
    t = 1.0 / (1.0 + pp * ax)
    poly = ((((a5 * t + a4) * t + a3) * t + a2) * t + a1) * t
    y = 1.0 - poly * jnp.exp(-ax * ax)
    return jnp.where(x >= 0, y, -y)


def _pallas_ffn_norm(src, attn, p, tile):
    """Post-norm transformer tail: x=LN1(src+attn); y=W2 gelu(W1 x); out=LN2(x+y).
    src, attn: [N, C] with N % tile == 0 (pre-padded by the caller)."""
    n, c = src.shape
    f = p['w1'].shape[1]
    assert n % tile == 0

    def kernel(s_ref, a_ref, w1_ref, b1_ref, w2_ref, b2_ref,
               g1_ref, be1_ref, g2_ref, be2_ref, o_ref):
        x = s_ref[...] + a_ref[...]
        mu = jnp.mean(x, axis=-1, keepdims=True)
        var = jnp.mean((x - mu) ** 2, axis=-1, keepdims=True)
        x = (x - mu) * lax.rsqrt(var + LN_EPS) * g1_ref[...] + be1_ref[...]
        h = jnp.dot(x, w1_ref[...], preferred_element_type=jnp.float32) + b1_ref[...]
        h = 0.5 * h * (1.0 + _erf(h * (1.0 / math.sqrt(2.0))))          # exact GELU
        y = jnp.dot(h, w2_ref[...], preferred_element_type=jnp.float32) + b2_ref[...]
        z = x + y
        mu2 = jnp.mean(z, axis=-1, keepdims=True)
        var2 = jnp.mean((z - mu2) ** 2, axis=-1, keepdims=True)
        o_ref[...] = (z - mu2) * lax.rsqrt(var2 + LN_EPS) * g2_ref[...] + be2_ref[...]

    return pl.pallas_call(
        kernel,
        out_shape=jax.ShapeDtypeStruct((n, c), jnp.float32),
        grid=(n // tile,),
        in_specs=[
            pl.BlockSpec((tile, c), lambda i: (i, 0)),
            pl.BlockSpec((tile, c), lambda i: (i, 0)),
            pl.BlockSpec((c, f), lambda i: (0, 0)),
            pl.BlockSpec((1, f), lambda i: (0, 0)),
            pl.BlockSpec((f, c), lambda i: (0, 0)),
            pl.BlockSpec((1, c), lambda i: (0, 0)),
            pl.BlockSpec((1, c), lambda i: (0, 0)),
            pl.BlockSpec((1, c), lambda i: (0, 0)),
            pl.BlockSpec((1, c), lambda i: (0, 0)),
            pl.BlockSpec((1, c), lambda i: (0, 0)),
        ],
        out_specs=pl.BlockSpec((tile, c), lambda i: (i, 0)),
        compiler_params=pltpu.CompilerParams(dimension_semantics=("parallel",)),
    )(src, attn, p['w1'], p['b1'], p['w2'], p['b2'],
      p['g1'], p['be1'], p['g2'], p['be2'])


# ----------------------------------------------------------------------------
# Plain-JAX glue (scatter/gather between flat voxels and windows, pos-embed)
# ----------------------------------------------------------------------------
def get_pos_embed(coors_in_win):
    """Sinusoidal in-window positional embedding (SSTv1.get_pos_embed), flat [N, d_model]."""
    win_x, win_y = WINDOW_SHAPE
    x = coors_in_win[:, 0].astype(jnp.float32) - win_x / 2.0
    y = coors_in_win[:, 1].astype(jnp.float32) - win_y / 2.0
    if NORMALIZE_POS:
        x = x / win_x * 2 * 3.1415
        y = y / win_y * 2 * 3.1415
    pos_length = D_MODEL // 2
    i = jnp.arange(pos_length, dtype=jnp.float32)
    inv_freq = POS_TEMPERATURE ** (2.0 * (i // 2) / pos_length)
    ex = x[:, None] / inv_freq[None, :]
    ey = y[:, None] / inv_freq[None, :]
    n = x.shape[0]
    ex = jnp.stack([jnp.sin(ex[:, ::2]), jnp.cos(ex[:, 1::2])], axis=-1).reshape(n, -1)
    ey = jnp.stack([jnp.sin(ey[:, ::2]), jnp.cos(ey[:, 1::2])], axis=-1).reshape(n, -1)
    return jnp.concatenate([ex, ey], axis=-1)


# ----------------------------------------------------------------------------
# Deterministic parameter init (matching the PyTorch module's parameter shapes)
# ----------------------------------------------------------------------------
def _xavier(key, shape):
    fan_out, fan_in = shape
    lim = math.sqrt(6.0 / (fan_in + fan_out))
    return jax.random.uniform(key, shape, jnp.float32, -lim, lim)


def init_params(key):
    C, Cin, F, H = D_MODEL, IN_CHANNEL, DIM_FF, NHEAD
    dh = C // H
    n_layers = NUM_BLOCKS * 2
    keys = iter(jax.random.split(key, 2 + 6 * n_layers))
    params = {}
    w0 = _xavier(next(keys), (C, Cin))                       # linear0.weight [out, in]
    b0 = jax.random.uniform(next(keys), (C,), jnp.float32,
                            -1.0 / math.sqrt(Cin), 1.0 / math.sqrt(Cin))
    params['linear0'] = {'w': w0.T, 'b': b0[None, :]}
    layers = []
    for _ in range(n_layers):
        in_proj = _xavier(next(keys), (3 * C, C))            # MHA in_proj_weight
        wq_t, wk_t, wv_t = in_proj[:C].T, in_proj[C:2 * C].T, in_proj[2 * C:].T
        wo_t = _xavier(next(keys), (C, C)).T                 # out_proj.weight.T
        w1_t = _xavier(next(keys), (F, C)).T                 # linear1
        b1 = jax.random.uniform(next(keys), (F,), jnp.float32,
                                -1.0 / math.sqrt(C), 1.0 / math.sqrt(C))
        w2_t = _xavier(next(keys), (C, F)).T                 # linear2
        b2 = jax.random.uniform(next(keys), (C,), jnp.float32,
                                -1.0 / math.sqrt(F), 1.0 / math.sqrt(F))
        layers.append({
            # fused q|k projection + fused v projection + per-head output projections
            'wqk': jnp.concatenate([wq_t, wk_t], axis=1),     # [C, 2C]
            'bqk': jnp.zeros((1, 2 * C), jnp.float32),        # MHA biases are zero-init
            'wv': wv_t,                                       # [C, C]
            'bv': jnp.zeros((1, C), jnp.float32),
            'wo_h': wo_t.reshape(H, dh, C),                   # [H, dh, C]
            'bo': jnp.zeros((1, C), jnp.float32),
            'w1': w1_t, 'b1': b1[None, :],
            'w2': w2_t, 'b2': b2[None, :],
            'g1': jnp.ones((1, C), jnp.float32), 'be1': jnp.zeros((1, C), jnp.float32),
            'g2': jnp.ones((1, C), jnp.float32), 'be2': jnp.zeros((1, C), jnp.float32),
        })
    params['layers'] = layers
    return params


# ----------------------------------------------------------------------------
# SSTv1 forward
# ----------------------------------------------------------------------------
def sst_forward(batch_dict, params):
    voxel_feat = batch_dict['voxel_feat']
    voxel_info = batch_dict['voxel_info']
    ind_list = batch_dict['flat2win_inds_list']
    coors = voxel_info['coors']   # int32 here (torch version asserts int64)

    n = voxel_feat.shape[0]
    row_tile = _choose_row_tile(n)
    n_pad = _round_up(n, row_tile)
    pad_rows = n_pad - n

    # Pad flat voxel rows ONCE; padded arrays are carried through all layers.
    feat_p = jnp.pad(voxel_feat, ((0, pad_rows), (0, 0)))

    # Per-shift precompute, hoisted out of the block/layer loop:
    # windowed positional embedding, key-padding mask, padded scatter indices.
    shift_ctx = []
    for s in range(NUM_SHIFTS):
        win_id = ind_list[s]['win_id']
        in_pos = ind_list[s]['in_win_pos']
        n_win = ind_list[s]['num_windows']
        wb = _choose_window_batch(n_win + 1)                  # +1 trash window for padded rows
        w_pad = _round_up(n_win + 1, wb)
        win_id_p = jnp.concatenate(
            [win_id, jnp.full((pad_rows,), n_win, win_id.dtype)])
        in_pos_p = jnp.concatenate(
            [in_pos, jnp.arange(pad_rows, dtype=in_pos.dtype) % MAX_TOKENS])
        pos_flat = get_pos_embed(voxel_info[f'coors_in_win_shift{s}'])
        pw = jnp.zeros((w_pad, MAX_TOKENS, D_MODEL), jnp.float32
                       ).at[win_id, in_pos].set(pos_flat)
        mask = jnp.zeros((w_pad, MAX_TOKENS), jnp.float32
                         ).at[win_id, in_pos].set(1.0)        # 1 = valid key, 0 = pad
        shift_ctx.append(dict(win_id=win_id_p, in_pos=in_pos_p,
                              w_pad=w_pad, wb=wb, pw=pw, mask=mask))

    # linear0
    out = _pallas_linear(feat_p, params['linear0']['w'], params['linear0']['b'], row_tile)

    # BasicShiftBlock x NUM_BLOCKS : each block runs 2 encoder layers on alternating shifts
    for blk in range(NUM_BLOCKS):
        for j in range(2):
            s = j % NUM_SHIFTS
            ctx = shift_ctx[s]
            lp = params['layers'][blk * 2 + j]
            xw = jnp.zeros((ctx['w_pad'], MAX_TOKENS, D_MODEL), jnp.float32
                           ).at[ctx['win_id'], ctx['in_pos']].set(out)
            attn_w = _pallas_window_mha(xw, ctx['pw'], ctx['mask'], lp, NHEAD, ctx['wb'])
            attn_flat = attn_w[ctx['win_id'], ctx['in_pos']]          # window2flat gather
            out = _pallas_ffn_norm(out, attn_flat, lp, row_tile)

    result = dict(batch_dict)
    result['pillar_features'] = out[:n]
    result['pillar_coords'] = coors[:, jnp.array([0, 2, 3])]
    return result


# ----------------------------------------------------------------------------
# Example run
# ----------------------------------------------------------------------------
if __name__ == "__main__":
    key = jax.random.PRNGKey(0)
    k_feat, k_coor, k_cw0, k_cw1, k_perm, k_param = jax.random.split(key, 6)

    N = 60
    voxel_feat = jax.random.normal(k_feat, (N, IN_CHANNEL), jnp.float32)
    batch_ids = (jnp.arange(N) >= N // 2).astype(jnp.int32)          # batch 0 / 1
    ys = jax.random.randint(k_coor, (N,), 0, 32, jnp.int32)
    xs = jax.random.randint(jax.random.fold_in(k_coor, 1), (N,), 0, 32, jnp.int32)
    coors = jnp.stack([batch_ids, jnp.zeros(N, jnp.int32), ys, xs], axis=1)

    # shift-0: sequential window fill; shift-1: permuted membership (shifted partition)
    idx = jnp.arange(N)
    win_id0, in_pos0 = idx // MAX_TOKENS, idx % MAX_TOKENS
    nwin0 = int(math.ceil(N / MAX_TOKENS))
    rank = jnp.argsort(jax.random.permutation(k_perm, N))
    win_id1, in_pos1 = rank // MAX_TOKENS, rank % MAX_TOKENS
    nwin1 = nwin0

    batch_dict = {
        'voxel_feat': voxel_feat,
        'flat2win_inds_list': [
            {'win_id': win_id0, 'in_win_pos': in_pos0, 'num_windows': nwin0},
            {'win_id': win_id1, 'in_win_pos': in_pos1, 'num_windows': nwin1},
        ],
        'voxel_info': {
            'coors': coors,
            'coors_in_win_shift0': jax.random.randint(k_cw0, (N, 2), 0, WINDOW_SHAPE[0], jnp.int32),
            'coors_in_win_shift1': jax.random.randint(k_cw1, (N, 2), 0, WINDOW_SHAPE[0], jnp.int32),
        },
    }

    params = init_params(k_param)
    out_dict = sst_forward(batch_dict, params)
    feats = jax.block_until_ready(out_dict['pillar_features'])
    assert feats.shape == (N, D_MODEL)
    assert out_dict['pillar_coords'].shape == (N, 3)
    assert bool(jnp.all(jnp.isfinite(feats)))
    print("KERNEL_OK")
</pallas_src>

<mosaic_0001>
module attributes {stable_mosaic.version = 11 : i64} {
  func.func @kernel(%arg0: i32, %arg1: memref<64x16xf32, #tpu.memory_space<vmem>>, %arg2: memref<16x32xf32, #tpu.memory_space<vmem>>, %arg3: memref<1x32xf32, #tpu.memory_space<vmem>>, %arg4: memref<64x32xf32, #tpu.memory_space<vmem>>) attributes {dimension_semantics = [#tpu.dimension_semantics<parallel>], iteration_bounds = array<i64: 1>, scalar_prefetch = 0 : i64, scratch_operands = 0 : i64, tpu.core_type = #tpu.core_type<tc>, window_params = [{transform_indices = @transform_0, window_bounds = array<i64: 64, 16>}, {pipeline_mode = #tpu.pipeline_mode<synchronous>, transform_indices = @transform_1, window_bounds = array<i64: 16, 32>}, {pipeline_mode = #tpu.pipeline_mode<synchronous>, transform_indices = @transform_2, window_bounds = array<i64: 1, 32>}, {transform_indices = @transform_3, window_bounds = array<i64: 64, 32>}]} {
    %c0 = arith.constant 0 : index
    %c0_0 = arith.constant 0 : index
    %0 = vector.load %arg1[%c0, %c0_0] : memref<64x16xf32, #tpu.memory_space<vmem>>, vector<64x16xf32>
    %c0_1 = arith.constant 0 : index
    %c0_2 = arith.constant 0 : index
    %1 = vector.load %arg2[%c0_1, %c0_2] : memref<16x32xf32, #tpu.memory_space<vmem>>, vector<16x32xf32>
    %cst = arith.constant dense<0.000000e+00> : vector<64x32xf32>
    %2 = tpu.matmul %0, %1, %cst {dimension_numbers = #tpu.dot_dimension_numbers<[1], [0], [0], [1], [0, 0, 1, 1], [], []>} : vector<64x16xf32>, vector<16x32xf32>, vector<64x32xf32> -> vector<64x32xf32>
    %c0_3 = arith.constant 0 : index
    %c0_4 = arith.constant 0 : index
    %3 = vector.load %arg3[%c0_3, %c0_4] : memref<1x32xf32, #tpu.memory_space<vmem>>, vector<1x32xf32>
    %4 = vector.broadcast %3 : vector<1x32xf32> to vector<64x32xf32>
    %5 = arith.addf %2, %4 : vector<64x32xf32>
    %c0_5 = arith.constant 0 : index
    %c0_6 = arith.constant 0 : index
    %6 = vector.load %arg4[%c0_5, %c0_6] : memref<64x32xf32, #tpu.memory_space<vmem>>, vector<64x32xf32>
    tpu.vector_store %arg4[%c0_5, %c0_6], %5 {strides = array<i32>} : memref<64x32xf32, #tpu.memory_space<vmem>>, vector<64x32xf32>,
    return
  }
  func.func @transform_0(%arg0: i32) -> (i32, i32) {
    %c0_i32 = arith.constant 0 : i32
    %c0_i32_0 = arith.constant 0 : i32
    return %arg0, %c0_i32 : i32, i32
  }
  func.func @transform_1(%arg0: i32) -> (i32, i32) {
    %c0_i32 = arith.constant 0 : i32
    %c0_i32_0 = arith.constant 0 : i32
    %c0_i32_1 = arith.constant 0 : i32
    return %c0_i32, %c0_i32_0 : i32, i32
  }
  func.func @transform_2(%arg0: i32) -> (i32, i32) {
    %c0_i32 = arith.constant 0 : i32
    %c0_i32_0 = arith.constant 0 : i32
    %c0_i32_1 = arith.constant 0 : i32
    return %c0_i32, %c0_i32_0 : i32, i32
  }
  func.func @transform_3(%arg0: i32) -> (i32, i32) {
    %c0_i32 = arith.constant 0 : i32
    %c0_i32_0 = arith.constant 0 : i32
    return %arg0, %c0_i32 : i32, i32
  }
}

</mosaic_0001>

<llo_original>
// kernel: tpu_custom_call.1
$region0: #{tpu_custom_call.1}
  #allocation0 [shape = 'u32[]', space=smem, size = 0x4, offset = 0x4, fixed_abs, tag = 'smem constant byte address 0x4 - core index']
  #allocation1 [shape = 'u32[72,128]{1,0:T(1,128)}', space=vmem, size = 0x9000, scoped, tag = 'internal scratch']
  %s0 = inlined_call_operand.vmem [shape: f32[64,16], index: 0, kind: input, shape index: {}]
  %s1 = inlined_call_operand.vmem [shape: f32[16,32], index: 1, kind: input, shape index: {}]
  %s2 = inlined_call_operand.vmem [shape: f32[1,32], index: 2, kind: input, shape index: {}]
  %s3 = inlined_call_operand.vmem [shape: f32[64,32], index: 3, kind: output, shape index: {}]
  %s4 = sld [smem:[#allocation0]]
  $region22: #{tpu_custom_call.1} parent=0
    _
  %s6 = ssub.s32 1, %s4
  %s7 = scalar_select 0, %s6, %s4
  // Predicated region
  $region2: #{tpu_custom_call.1} parent=0 // pred_check
    _
  $region3: #{tpu_custom_call.1} parent=0 // pred_check_branch
    %9 = sbr.rel (0) target = $region5
  $region4: #{tpu_custom_call.1} parent=0 // pred_region
    _
  $region5: #{tpu_custom_call.1} parent=0 // pred_fallthru
    _
  // Predicated region
  $region6: #{tpu_custom_call.1} parent=0 // pred_check
    _
  $region7: #{tpu_custom_call.1} parent=0 // pred_check_branch
    %11 = sbr.rel (0) target = $region9
  $region8: #{tpu_custom_call.1} parent=0 // pred_region
    _
  $region9: #{tpu_custom_call.1} parent=0 // pred_fallthru
    _
  // Predicated region
  $region10: #{tpu_custom_call.1} parent=0 // pred_check
    _
  $region11: #{tpu_custom_call.1} parent=0 // pred_check_branch
    %13 = sbr.rel (0) target = $region13
  $region12: #{tpu_custom_call.1} parent=0 // pred_region
    _
  $region13: #{tpu_custom_call.1} parent=0 // pred_fallthru
    _
  %v14 = vld [vmem:[%s0] sm:$0xff]
  %v15 = vld [vmem:[%s0 + $0x8] sm:$0xff]
  %v16 = vld [vmem:[%s0 + $0x10] sm:$0xff]
  %v17 = vld [vmem:[%s0 + $0x18] sm:$0xff]
  %v18 = vld [vmem:[%s0 + $0x20] sm:$0xff]
  %v19 = vld [vmem:[%s0 + $0x28] sm:$0xff]
  %v20 = vld [vmem:[%s0 + $0x30] sm:$0xff]
  %v21 = vld [vmem:[%s0 + $0x38] sm:$0xff]
  %v22 = vld [vmem:[%s1] sm:$0xff]
  %v23 = vld [vmem:[%s1 + $0x8] sm:$0xff]
  %v24 = vld [vmem:[%s2] sm:$0x1]
  %v26 = vperm.slane %v24, 0
  %vm28 = vcmask 130048
  %v30 = vsel %vm28, %v14, 0
  %v33 = vsel %vm28, %v15, 0
  %v36 = vsel %vm28, %v16, 0
  %v39 = vsel %vm28, %v17, 0
  %v42 = vsel %vm28, %v18, 0
  %v45 = vsel %vm28, %v19, 0
  %v48 = vsel %vm28, %v20, 0
  %v51 = vsel %vm28, %v21, 0
  %53 = vmatpush.msra.mxu0 0.0
  %54 = vmatpush.msra.mxu0 0.0
  %55 = vmatpush.msra.mxu0 0.0
  %56 = vmatpush.msra.mxu0 0.0
  %57 = vmatpush.msra.mxu0 0.0
  %58 = vmatpush.msra.mxu0 0.0
  %59 = vmatpush.msra.mxu0 0.0
  %60 = vmatpush.msra.mxu0 0.0
  %61 = vmatpush.msra.mxu0 0.0
  %62 = vmatpush.msra.mxu0 0.0
  %63 = vmatpush.msra.mxu0 0.0
  %64 = vmatpush.msra.mxu0 0.0
  %65 = vmatpush.msra.mxu0 0.0
  %66 = vmatpush.msra.mxu0 0.0
  %67 = vmatpush.msra.mxu0 %v23
  %68 = vmatpush.msra.mxu0 %v22
  %69 = vmatmul.f32.gmra.mxu0 %v30
  %v70 = vpop.f32.mrf.mxu0
  %v71 = vadd.f32 %v26, %v70
  %72 = vmatmul.f32.gmra.mxu0 %v33
  %v73 = vpop.f32.mrf.mxu0
  %v74 = vadd.f32 %v26, %v73
  %75 = vmatmul.f32.gmra.mxu0 %v36
  %v76 = vpop.f32.mrf.mxu0
  %v77 = vadd.f32 %v26, %v76
  %78 = vmatmul.f32.gmra.mxu0 %v39
  %v79 = vpop.f32.mrf.mxu0
  %v80 = vadd.f32 %v26, %v79
  %81 = vmatmul.f32.gmra.mxu0 %v42
  %v82 = vpop.f32.mrf.mxu0
  %v83 = vadd.f32 %v26, %v82
  %84 = vmatmul.f32.gmra.mxu0 %v45
  %v85 = vpop.f32.mrf.mxu0
  %v86 = vadd.f32 %v26, %v85
  %87 = vmatmul.f32.gmra.mxu0 %v48
  %v88 = vpop.f32.mrf.mxu0
  %v89 = vadd.f32 %v26, %v88
  %90 = vmatmul.f32.gmra.mxu0 %v51
  %v91 = vpop.f32.mrf.mxu0
  %v92 = vadd.f32 %v26, %v91
  %93 = vdwg.mxu0
  %vm94 = vcmask 261120
  %95 = vst.msk [vmem:[%s3] sm:$0xff] %vm94, %v71
  %96 = vst.msk [vmem:[%s3 + $0x8] sm:$0xff] %vm94, %v74
  %97 = vst.msk [vmem:[%s3 + $0x10] sm:$0xff] %vm94, %v77
  %98 = vst.msk [vmem:[%s3 + $0x18] sm:$0xff] %vm94, %v80
  %99 = vst.msk [vmem:[%s3 + $0x20] sm:$0xff] %vm94, %v83
  %100 = vst.msk [vmem:[%s3 + $0x28] sm:$0xff] %vm94, %v86
  %101 = vst.msk [vmem:[%s3 + $0x30] sm:$0xff] %vm94, %v89
  %102 = vst.msk [vmem:[%s3 + $0x38] sm:$0xff] %vm94, %v92
  // Predicated region
  $region14: #{tpu_custom_call.1} parent=0 // pred_check
    _
  $region15: #{tpu_custom_call.1} parent=0 // pred_check_branch
    %104 = sbr.rel (0) target = $region17
  $region16: #{tpu_custom_call.1} parent=0 // pred_region
    _
  $region17: #{tpu_custom_call.1} parent=0 // pred_fallthru
    _
  // Predicated region
  $region18: #{tpu_custom_call.1} parent=0 // pred_check
    _
  $region19: #{tpu_custom_call.1} parent=0 // pred_check_branch
    %106 = sbr.rel (0) target = $region21
  $region20: #{tpu_custom_call.1} parent=0 // pred_region
    _
  $region21: #{tpu_custom_call.1} parent=0 // pred_fallthru
    _

</llo_original>
